<compile_context>
chip_gen: v7x
topology: tpu7x:2x2x1
jax: 0.10.0
libtpu: 0.0.40
codegen_flags: <defaults>
</compile_context>

<pallas_src>
import jax
import jax.numpy as jnp
from jax.experimental import pallas as pl


# ----------------------------- fused Pallas kernel ---------------------------

def _prefix_mlp_kernel(dec_x_ref, act_x_ref, top_x_ref,
                       dw1, db1, dw2, db2, dw3, db3,
                       aw1, ab1, aw2, ab2,
                       tw1, tb1, tw2, tb2,
                       dec_o, act_o, top_o):
    """All three control_trans MLPs in one launch (single grid step).

    Inputs are the *already gathered* per-sample embedding rows, so every
    branch is tiny and whole-array VMEM blocks are used (no grid).  Weights
    are bf16; dots accumulate in f32 and the tanh / bias adds stay f32.
    """
    def dense(x, w_ref, b_ref):
        w = w_ref[...]
        return jnp.dot(x.astype(w.dtype), w,
                       preferred_element_type=jnp.float32) + b_ref[...]

    # decoder_control_trans: Linear -> Tanh -> Linear -> Tanh -> Linear
    h = jnp.tanh(dense(dec_x_ref[...], dw1, db1))
    h = jnp.tanh(dense(h, dw2, db2))
    dec_o[...] = dense(h, dw3, db3).astype(dec_o.dtype)

    # action_control_trans: Linear -> Tanh -> Linear (on gathered rows)
    ha = jnp.tanh(dense(act_x_ref[...], aw1, ab1))
    act_o[...] = dense(ha, aw2, ab2).astype(act_o.dtype)

    # topic_control_trans: Linear -> Tanh -> Linear (on gathered rows)
    ht = jnp.tanh(dense(top_x_ref[...], tw1, tb1))
    top_o[...] = dense(ht, tw2, tb2).astype(top_o.dtype)


def prefix_mlps_pallas(dec_x, act_x, top_x, params, cfg):
    """One fused, grid-less pallas_call for all three control_trans MLPs.

    dec_x: (T, E)      shared decoder-prefix embeddings (full table)
    act_x: (B*na, E)   gathered per-sample action embeddings
    top_x: (B*nt, E)   gathered per-sample topic embeddings
    Returns f32 (dec_out [T, L*2*E], act_out [B*na, L*2*E], top_out [B*nt, L*2*E]).
    """
    E, L = cfg['n_embd'], cfg['n_layer']
    out_dim = L * 2 * E

    flat = [dec_x, act_x, top_x]
    for name in ('dec_l1', 'dec_l2', 'dec_l3', 'act_l1', 'act_l2', 'top_l1', 'top_l2'):
        w, b = params[name]
        flat += [w, b.reshape(1, -1)]            # 2-D bias for clean VMEM layout

    out_shapes = (jax.ShapeDtypeStruct((dec_x.shape[0], out_dim), jnp.float32),
                  jax.ShapeDtypeStruct((act_x.shape[0], out_dim), jnp.float32),
                  jax.ShapeDtypeStruct((top_x.shape[0], out_dim), jnp.float32))

    # Grid-less call: every input/output is a whole-array VMEM block, so the
    # whole thing is one pipeline step and one contiguous bundle stream.
    return pl.pallas_call(
        _prefix_mlp_kernel,
        out_shape=out_shapes,
    )(*flat)


# ------------------------------ parameter init -------------------------------

def init_params(key, cfg):
    E, M, L = cfg['n_embd'], cfg['mid_dim'], cfg['n_layer']
    out_dim = L * 2 * E
    na_rows = cfg['n_action_toks'] * cfg['n_actions']
    nt_rows = cfg['n_topic_toks'] * cfg['n_topics']
    wdtype = cfg.get('param_dtype', jnp.bfloat16)

    keys = iter(jax.random.split(key, 32))

    def lin(din, dout):
        w = (jax.random.normal(next(keys), (din, dout), jnp.float32)
             / jnp.sqrt(din)).astype(wdtype)
        b = jax.random.normal(next(keys), (dout,), jnp.float32) * 0.01   # f32 bias
        return (w, b)

    def emb(n):
        return (jax.random.normal(next(keys), (n, E), jnp.float32) * 0.02).astype(wdtype)

    return {
        # nn.Embedding tables (indexed with arange(...) -> the full table)
        'decoder_wte': emb(cfg['num_token']),
        'action_wte':  emb(na_rows),
        'topic_wte':   emb(nt_rows),
        # decoder_control_trans: Linear(E,M) Tanh Linear(M,M) Tanh Linear(M, L*2*E)
        'dec_l1': lin(E, M), 'dec_l2': lin(M, M), 'dec_l3': lin(M, out_dim),
        # action_control_trans / topic_control_trans: Linear(E,M) Tanh Linear(M, L*2*E)
        'act_l1': lin(E, M), 'act_l2': lin(M, out_dim),
        'top_l1': lin(E, M), 'top_l2': lin(M, out_dim),
    }


# --------------------------------- forward -----------------------------------

def prefix_tuning_forward(params, batch, cfg):
    """Mirrors PrefixTuningTemplate.forward (use_goal_topic=1, dropout=0)."""
    B = batch['input_ids'].shape[0]
    T, L, H, E = cfg['num_token'], cfg['n_layer'], cfg['n_head'], cfg['n_embd']
    Hd = E // H
    na, nt = cfg['n_action_toks'], cfg['n_topic_toks']
    P = na + nt + T                                          # total prefix length

    # ---- gather-first: fetch only the embedding rows the forward consumes.
    #      Valid because the control_trans MLPs are row-wise and dropout == 0.
    # NOTE: JAX gather clips out-of-range indices while PyTorch slicing would
    #       error; callers must keep action_id/topic_id within table bounds.
    a_idx = batch['action_id'][:, None] + jnp.arange(na)[None, :]   # (B, na)
    t_idx = batch['topic_id'][:, None] + jnp.arange(nt)[None, :]    # (B, nt)
    act_x = params['action_wte'][a_idx].reshape(B * na, E)
    top_x = params['topic_wte'][t_idx].reshape(B * nt, E)

    # ---- one fused, single-step Pallas launch for all three MLPs ----
    dec_o, act_o, top_o = prefix_mlps_pallas(params['decoder_wte'], act_x, top_x,
                                             params, cfg)

    # ---- layout epilogue: per-branch reshape+transpose fuses into the final
    #      concat; no (B, P, L*2*E) intermediate is materialized ----
    L2 = 2 * L
    act5 = act_o.reshape(B, na, L2, H, Hd).transpose(2, 0, 3, 1, 4)  # (L2,B,H,na,Hd)
    top5 = top_o.reshape(B, nt, L2, H, Hd).transpose(2, 0, 3, 1, 4)  # (L2,B,H,nt,Hd)
    dec5 = dec_o.reshape(1, T, L2, H, Hd).transpose(2, 0, 3, 1, 4)   # (L2,1,H,T,Hd)
    dec5 = jnp.broadcast_to(dec5, (L2, B, H, T, Hd))
    full = jnp.concatenate([act5, top5, dec5], axis=3)               # (L2,B,H,P,Hd)
    past_key_values = tuple(full[2 * l:2 * l + 2] for l in range(L))

    out_batch = dict(batch)
    if 'attention_mask' in batch:
        am = batch['attention_mask']
        out_batch['attention_mask'] = jnp.concatenate(
            [jnp.ones((B, P), dtype=am.dtype), am], axis=-1)
    out_batch['past_key_values'] = past_key_values
    return out_batch


# --------------------------- pure-JAX reference -------------------------------

def _mlp_ref(x, layers):
    h = x
    for i, (w, b) in enumerate(layers):
        h = jnp.dot(h.astype(w.dtype), w, preferred_element_type=jnp.float32) + b
        if i < len(layers) - 1:
            h = jnp.tanh(h)
    return h


def prefix_tuning_forward_ref(params, batch, cfg):
    """Op-for-op mirror of the PyTorch module (dropout=0, use_goal_topic=1).
    Runs the MLPs on the FULL action/topic tables and slices afterwards, so it
    also validates the gather-before-MLP commutation used by the Pallas path."""
    B = batch['input_ids'].shape[0]
    T, L, H, E = cfg['num_token'], cfg['n_layer'], cfg['n_head'], cfg['n_embd']
    Hd = E // H
    na, nt = cfg['n_action_toks'], cfg['n_topic_toks']

    dec = _mlp_ref(params['decoder_wte'],
                   [params['dec_l1'], params['dec_l2'], params['dec_l3']])
    dec = dec.reshape(1, T, L * 2, H, Hd)
    dec = jnp.transpose(dec, (2, 0, 3, 1, 4))
    dec_layers = [jnp.broadcast_to(dec[2 * l:2 * l + 2], (2, B, H, T, Hd))
                  for l in range(L)]

    act = _mlp_ref(params['action_wte'], [params['act_l1'], params['act_l2']])
    top = _mlp_ref(params['topic_wte'], [params['top_l1'], params['top_l2']])
    a_idx = batch['action_id'][:, None] + jnp.arange(na)[None, :]
    t_idx = batch['topic_id'][:, None] + jnp.arange(nt)[None, :]
    at = jnp.concatenate([act[a_idx], top[t_idx]], axis=1)
    at = at.reshape(B, na + nt, L * 2, H, Hd)
    at = jnp.transpose(at, (2, 0, 3, 1, 4))
    at_layers = [at[2 * l:2 * l + 2] for l in range(L)]

    return tuple(jnp.concatenate([a, b], axis=-2)
                 for a, b in zip(at_layers, dec_layers))


# ----------------------------------- main -------------------------------------

if __name__ == "__main__":
    cfg = dict(num_token=8, n_layer=2, n_embd=32, n_head=4, mid_dim=64,
               n_action_toks=2, n_topic_toks=2, n_actions=19, n_topics=646,
               param_dtype=jnp.bfloat16)

    key = jax.random.PRNGKey(0)
    pkey, bkey = jax.random.split(key)
    params = init_params(pkey, cfg)

    B, S = 2, 8
    k1, k2, k3 = jax.random.split(bkey, 3)
    batch = {
        'input_ids': jax.random.randint(k1, (B, S), 0, 100),
        'attention_mask': jnp.ones((B, S), dtype=jnp.int32),
        'action_id': jax.random.randint(
            k2, (B,), 0,
            cfg['n_action_toks'] * cfg['n_actions'] - cfg['n_action_toks'] + 1),
        'topic_id': jax.random.randint(
            k3, (B,), 0,
            cfg['n_topic_toks'] * cfg['n_topics'] - cfg['n_topic_toks'] + 1),
    }

    out = prefix_tuning_forward(params, batch, cfg)
    jax.block_until_ready(out['past_key_values'])

    # ---- shape checks against PyTorch semantics ----
    T, L, H, E = cfg['num_token'], cfg['n_layer'], cfg['n_head'], cfg['n_embd']
    prefix_len = T + cfg['n_action_toks'] + cfg['n_topic_toks']
    assert len(out['past_key_values']) == L
    for pkv in out['past_key_values']:
        assert pkv.shape == (2, B, H, prefix_len, E // H), pkv.shape
    assert out['attention_mask'].shape == (B, prefix_len + S)

    # ---- numerical check: fused gather-first Pallas path vs pure-JAX reference
    #      (reference keeps the original MLP-then-slice order) ----
    ref_pkv = prefix_tuning_forward_ref(params, batch, cfg)
    for got, ref in zip(out['past_key_values'], ref_pkv):
        assert jnp.allclose(got, ref, atol=1e-4, rtol=1e-3), \
            float(jnp.max(jnp.abs(got - ref)))

    print("KERNEL_OK")
</pallas_src>

<mosaic_0001>
module attributes {stable_mosaic.version = 11 : i64} {
  func.func @_prefix_mlp_kernel(%arg0: memref<8x32xbf16, #tpu.memory_space<vmem>>, %arg1: memref<4x32xbf16, #tpu.memory_space<vmem>>, %arg2: memref<4x32xbf16, #tpu.memory_space<vmem>>, %arg3: memref<32x64xbf16, #tpu.memory_space<vmem>>, %arg4: memref<1x64xf32, #tpu.memory_space<vmem>>, %arg5: memref<64x64xbf16, #tpu.memory_space<vmem>>, %arg6: memref<1x64xf32, #tpu.memory_space<vmem>>, %arg7: memref<64x128xbf16, #tpu.memory_space<vmem>>, %arg8: memref<1x128xf32, #tpu.memory_space<vmem>>, %arg9: memref<32x64xbf16, #tpu.memory_space<vmem>>, %arg10: memref<1x64xf32, #tpu.memory_space<vmem>>, %arg11: memref<64x128xbf16, #tpu.memory_space<vmem>>, %arg12: memref<1x128xf32, #tpu.memory_space<vmem>>, %arg13: memref<32x64xbf16, #tpu.memory_space<vmem>>, %arg14: memref<1x64xf32, #tpu.memory_space<vmem>>, %arg15: memref<64x128xbf16, #tpu.memory_space<vmem>>, %arg16: memref<1x128xf32, #tpu.memory_space<vmem>>, %arg17: memref<8x128xf32, #tpu.memory_space<vmem>>, %arg18: memref<4x128xf32, #tpu.memory_space<vmem>>, %arg19: memref<4x128xf32, #tpu.memory_space<vmem>>) attributes {dimension_semantics = [], scalar_prefetch = 0 : i64, scratch_operands = 0 : i64, tpu.core_type = #tpu.core_type<tc>} {
    %c0 = arith.constant 0 : index
    %c0_0 = arith.constant 0 : index
    %0 = vector.load %arg0[%c0, %c0_0] : memref<8x32xbf16, #tpu.memory_space<vmem>>, vector<8x32xbf16>
    %c0_1 = arith.constant 0 : index
    %c0_2 = arith.constant 0 : index
    %1 = vector.load %arg3[%c0_1, %c0_2] : memref<32x64xbf16, #tpu.memory_space<vmem>>, vector<32x64xbf16>
    %cst = arith.constant dense<0.000000e+00> : vector<8x64xf32>
    %2 = tpu.matmul %0, %1, %cst {dimension_numbers = #tpu.dot_dimension_numbers<[1], [0], [0], [1], [0, 0, 1, 1], [], []>} : vector<8x32xbf16>, vector<32x64xbf16>, vector<8x64xf32> -> vector<8x64xf32>
    %c0_3 = arith.constant 0 : index
    %c0_4 = arith.constant 0 : index
    %3 = vector.load %arg4[%c0_3, %c0_4] : memref<1x64xf32, #tpu.memory_space<vmem>>, vector<1x64xf32>
    %4 = vector.broadcast %3 : vector<1x64xf32> to vector<8x64xf32>
    %5 = arith.addf %2, %4 : vector<8x64xf32>
    %6 = math.tanh %5 : vector<8x64xf32>
    %c0_5 = arith.constant 0 : index
    %c0_6 = arith.constant 0 : index
    %7 = vector.load %arg5[%c0_5, %c0_6] : memref<64x64xbf16, #tpu.memory_space<vmem>>, vector<64x64xbf16>
    %8 = arith.truncf %6 : vector<8x64xf32> to vector<8x64xbf16>
    %cst_7 = arith.constant dense<0.000000e+00> : vector<8x64xf32>
    %9 = tpu.matmul %8, %7, %cst_7 {dimension_numbers = #tpu.dot_dimension_numbers<[1], [0], [0], [1], [0, 0, 1, 1], [], []>} : vector<8x64xbf16>, vector<64x64xbf16>, vector<8x64xf32> -> vector<8x64xf32>
    %c0_8 = arith.constant 0 : index
    %c0_9 = arith.constant 0 : index
    %10 = vector.load %arg6[%c0_8, %c0_9] : memref<1x64xf32, #tpu.memory_space<vmem>>, vector<1x64xf32>
    %11 = vector.broadcast %10 : vector<1x64xf32> to vector<8x64xf32>
    %12 = arith.addf %9, %11 : vector<8x64xf32>
    %13 = math.tanh %12 : vector<8x64xf32>
    %c0_10 = arith.constant 0 : index
    %c0_11 = arith.constant 0 : index
    %14 = vector.load %arg7[%c0_10, %c0_11] : memref<64x128xbf16, #tpu.memory_space<vmem>>, vector<64x128xbf16>
    %15 = arith.truncf %13 : vector<8x64xf32> to vector<8x64xbf16>
    %cst_12 = arith.constant dense<0.000000e+00> : vector<8x128xf32>
    %16 = tpu.matmul %15, %14, %cst_12 {dimension_numbers = #tpu.dot_dimension_numbers<[1], [0], [0], [1], [0, 0, 1, 1], [], []>} : vector<8x64xbf16>, vector<64x128xbf16>, vector<8x128xf32> -> vector<8x128xf32>
    %c0_13 = arith.constant 0 : index
    %c0_14 = arith.constant 0 : index
    %17 = vector.load %arg8[%c0_13, %c0_14] : memref<1x128xf32, #tpu.memory_space<vmem>>, vector<1x128xf32>
    %18 = vector.broadcast %17 : vector<1x128xf32> to vector<8x128xf32>
    %19 = arith.addf %16, %18 : vector<8x128xf32>
    %c0_15 = arith.constant 0 : index
    %c0_16 = arith.constant 0 : index
    %20 = vector.load %arg17[%c0_15, %c0_16] : memref<8x128xf32, #tpu.memory_space<vmem>>, vector<8x128xf32>
    tpu.vector_store %arg17[%c0_15, %c0_16], %19 {strides = array<i32>} : memref<8x128xf32, #tpu.memory_space<vmem>>, vector<8x128xf32>,
    %c0_17 = arith.constant 0 : index
    %c0_18 = arith.constant 0 : index
    %21 = vector.load %arg1[%c0_17, %c0_18] : memref<4x32xbf16, #tpu.memory_space<vmem>>, vector<4x32xbf16>
    %c0_19 = arith.constant 0 : index
    %c0_20 = arith.constant 0 : index
    %22 = vector.load %arg9[%c0_19, %c0_20] : memref<32x64xbf16, #tpu.memory_space<vmem>>, vector<32x64xbf16>
    %cst_21 = arith.constant dense<0.000000e+00> : vector<4x64xf32>
    %23 = tpu.matmul %21, %22, %cst_21 {dimension_numbers = #tpu.dot_dimension_numbers<[1], [0], [0], [1], [0, 0, 1, 1], [], []>} : vector<4x32xbf16>, vector<32x64xbf16>, vector<4x64xf32> -> vector<4x64xf32>
    %c0_22 = arith.constant 0 : index
    %c0_23 = arith.constant 0 : index
    %24 = vector.load %arg10[%c0_22, %c0_23] : memref<1x64xf32, #tpu.memory_space<vmem>>, vector<1x64xf32>
    %25 = vector.broadcast %24 : vector<1x64xf32> to vector<4x64xf32>
    %26 = arith.addf %23, %25 : vector<4x64xf32>
    %27 = math.tanh %26 : vector<4x64xf32>
    %c0_24 = arith.constant 0 : index
    %c0_25 = arith.constant 0 : index
    %28 = vector.load %arg11[%c0_24, %c0_25] : memref<64x128xbf16, #tpu.memory_space<vmem>>, vector<64x128xbf16>
    %29 = arith.truncf %27 : vector<4x64xf32> to vector<4x64xbf16>
    %cst_26 = arith.constant dense<0.000000e+00> : vector<4x128xf32>
    %30 = tpu.matmul %29, %28, %cst_26 {dimension_numbers = #tpu.dot_dimension_numbers<[1], [0], [0], [1], [0, 0, 1, 1], [], []>} : vector<4x64xbf16>, vector<64x128xbf16>, vector<4x128xf32> -> vector<4x128xf32>
    %c0_27 = arith.constant 0 : index
    %c0_28 = arith.constant 0 : index
    %31 = vector.load %arg12[%c0_27, %c0_28] : memref<1x128xf32, #tpu.memory_space<vmem>>, vector<1x128xf32>
    %32 = vector.broadcast %31 : vector<1x128xf32> to vector<4x128xf32>
    %33 = arith.addf %30, %32 : vector<4x128xf32>
    %c0_29 = arith.constant 0 : index
    %c0_30 = arith.constant 0 : index
    %34 = vector.load %arg18[%c0_29, %c0_30] : memref<4x128xf32, #tpu.memory_space<vmem>>, vector<4x128xf32>
    tpu.vector_store %arg18[%c0_29, %c0_30], %33 {strides = array<i32>} : memref<4x128xf32, #tpu.memory_space<vmem>>, vector<4x128xf32>,
    %c0_31 = arith.constant 0 : index
    %c0_32 = arith.constant 0 : index
    %35 = vector.load %arg2[%c0_31, %c0_32] : memref<4x32xbf16, #tpu.memory_space<vmem>>, vector<4x32xbf16>
    %c0_33 = arith.constant 0 : index
    %c0_34 = arith.constant 0 : index
    %36 = vector.load %arg13[%c0_33, %c0_34] : memref<32x64xbf16, #tpu.memory_space<vmem>>, vector<32x64xbf16>
    %cst_35 = arith.constant dense<0.000000e+00> : vector<4x64xf32>
    %37 = tpu.matmul %35, %36, %cst_35 {dimension_numbers = #tpu.dot_dimension_numbers<[1], [0], [0], [1], [0, 0, 1, 1], [], []>} : vector<4x32xbf16>, vector<32x64xbf16>, vector<4x64xf32> -> vector<4x64xf32>
    %c0_36 = arith.constant 0 : index
    %c0_37 = arith.constant 0 : index
    %38 = vector.load %arg14[%c0_36, %c0_37] : memref<1x64xf32, #tpu.memory_space<vmem>>, vector<1x64xf32>
    %39 = vector.broadcast %38 : vector<1x64xf32> to vector<4x64xf32>
    %40 = arith.addf %37, %39 : vector<4x64xf32>
    %41 = math.tanh %40 : vector<4x64xf32>
    %c0_38 = arith.constant 0 : index
    %c0_39 = arith.constant 0 : index
    %42 = vector.load %arg15[%c0_38, %c0_39] : memref<64x128xbf16, #tpu.memory_space<vmem>>, vector<64x128xbf16>
    %43 = arith.truncf %41 : vector<4x64xf32> to vector<4x64xbf16>
    %cst_40 = arith.constant dense<0.000000e+00> : vector<4x128xf32>
    %44 = tpu.matmul %43, %42, %cst_40 {dimension_numbers = #tpu.dot_dimension_numbers<[1], [0], [0], [1], [0, 0, 1, 1], [], []>} : vector<4x64xbf16>, vector<64x128xbf16>, vector<4x128xf32> -> vector<4x128xf32>
    %c0_41 = arith.constant 0 : index
    %c0_42 = arith.constant 0 : index
    %45 = vector.load %arg16[%c0_41, %c0_42] : memref<1x128xf32, #tpu.memory_space<vmem>>, vector<1x128xf32>
    %46 = vector.broadcast %45 : vector<1x128xf32> to vector<4x128xf32>
    %47 = arith.addf %44, %46 : vector<4x128xf32>
    %c0_43 = arith.constant 0 : index
    %c0_44 = arith.constant 0 : index
    %48 = vector.load %arg19[%c0_43, %c0_44] : memref<4x128xf32, #tpu.memory_space<vmem>>, vector<4x128xf32>
    tpu.vector_store %arg19[%c0_43, %c0_44], %47 {strides = array<i32>} : memref<4x128xf32, #tpu.memory_space<vmem>>, vector<4x128xf32>,
    return
  }
}

</mosaic_0001>

<llo_original>
// kernel: tpu_custom_call.1
$region0: #{tpu_custom_call.1}
  #allocation0 [shape = 'u32[]', space=smem, size = 0x4, offset = 0x4, fixed_abs, tag = 'smem constant byte address 0x4 - core index']
  #allocation1 [shape = 'u32[144,128]{1,0:T(1,128)}', space=vmem, size = 0x12000, scoped, tag = 'internal scratch']
  %s0 = inlined_call_operand.hbm [shape: bf16[8,32], index: 0, kind: input, shape index: {}]
  %s1 = inlined_call_operand.hbm [shape: bf16[4,32], index: 1, kind: input, shape index: {}]
  %s2 = inlined_call_operand.hbm [shape: bf16[4,32], index: 2, kind: input, shape index: {}]
  %s3 = inlined_call_operand.hbm [shape: bf16[32,64], index: 3, kind: input, shape index: {}]
  %s4 = inlined_call_operand.vmem [shape: f32[1,64], index: 4, kind: input, shape index: {}]
  %s5 = inlined_call_operand.hbm [shape: bf16[64,64], index: 5, kind: input, shape index: {}]
  %s6 = inlined_call_operand.hbm [shape: f32[1,64], index: 6, kind: input, shape index: {}]
  %s7 = inlined_call_operand.hbm [shape: bf16[64,128], index: 7, kind: input, shape index: {}]
  %s8 = inlined_call_operand.hbm [shape: f32[1,128], index: 8, kind: input, shape index: {}]
  %s9 = inlined_call_operand.hbm [shape: bf16[32,64], index: 9, kind: input, shape index: {}]
  %s10 = inlined_call_operand.hbm [shape: f32[1,64], index: 10, kind: input, shape index: {}]
  %s11 = inlined_call_operand.vmem [shape: bf16[64,128], index: 11, kind: input, shape index: {}]
  %s12 = inlined_call_operand.hbm [shape: f32[1,128], index: 12, kind: input, shape index: {}]
  %s13 = inlined_call_operand.vmem [shape: bf16[32,64], index: 13, kind: input, shape index: {}]
  %s14 = inlined_call_operand.vmem [shape: f32[1,64], index: 14, kind: input, shape index: {}]
  %s15 = inlined_call_operand.hbm [shape: bf16[64,128], index: 15, kind: input, shape index: {}]
  %s16 = inlined_call_operand.vmem [shape: f32[1,128], index: 16, kind: input, shape index: {}]
  %s17 = inlined_call_operand.hbm [shape: f32[8,128], index: 17, kind: output, shape index: {0}]
  %s18 = inlined_call_operand.hbm [shape: f32[4,128], index: 18, kind: output, shape index: {1}]
  %s19 = inlined_call_operand.hbm [shape: f32[4,128], index: 19, kind: output, shape index: {2}]
  %20 = xla_tuple %s17, %s18, %s19
  %s21 = sld [smem:[#allocation0]]
  $region142: #{tpu_custom_call.1} parent=0
    _
  %s23 = ssub.s32 1, %s21
  %s24 = scalar_select 0, %s23, %s21
  $region1: #{tpu_custom_call.1} parent=0
    #allocation2 [shape = 'u8[2048]{0}', space=vmem, size = 0x800, scoped, tag = 'input window, operand 0, single buffered']
    #allocation3 [shape = 's32[1]{0}', space=sflag, size = 0x4, scoped, tag = 'scoped memory for tpu_custom_call.1']
    #allocation4 [shape = 's32[1]{0}', space=sflag, size = 0x4, scoped, tag = 'scoped memory for tpu_custom_call.1']
    #allocation5 [shape = 'u8[1024]{0}', space=vmem, size = 0x400, scoped, tag = 'input window, operand 1, single buffered']
    #allocation6 [shape = 's32[1]{0}', space=sflag, size = 0x4, scoped, tag = 'scoped memory for tpu_custom_call.1']
    #allocation7 [shape = 'u8[1024]{0}', space=vmem, size = 0x400, scoped, tag = 'input window, operand 2, single buffered']
    #allocation8 [shape = 'u8[8192]{0}', space=vmem, size = 0x2000, scoped, tag = 'input window, operand 3, single buffered']
    #allocation9 [shape = 's32[1]{0}', space=sflag, size = 0x4, scoped, tag = 'scoped memory for tpu_custom_call.1']
    #allocation10 [shape = 'u8[16384]{0}', space=vmem, size = 0x4000, scoped, tag = 'input window, operand 5, single buffered']
    #allocation11 [shape = 'u8[512]{0}', space=vmem, size = 0x400, scoped, tag = 'input window, operand 6, single buffered']
    #allocation12 [shape = 's32[1]{0}', space=sflag, size = 0x4, scoped, tag = 'scoped memory for tpu_custom_call.1']
    #allocation13 [shape = 'u8[16384]{0}', space=vmem, size = 0x4000, scoped, tag = 'input window, operand 7, single buffered']
    #allocation14 [shape = 'u8[512]{0}', space=vmem, size = 0x400, scoped, tag = 'input window, operand 8, single buffered']
    #allocation15 [shape = 's32[1]{0}', space=sflag, size = 0x4, scoped, tag = 'scoped memory for tpu_custom_call.1']
    #allocation16 [shape = 'u8[8192]{0}', space=vmem, size = 0x2000, scoped, tag = 'input window, operand 9, single buffered']
    #allocation17 [shape = 'u8[512]{0}', space=vmem, size = 0x400, scoped, tag = 'input window, operand 10, single buffered']
    #allocation18 [shape = 's32[1]{0}', space=sflag, size = 0x4, scoped, tag = 'scoped memory for tpu_custom_call.1']
    #allocation19 [shape = 'u8[512]{0}', space=vmem, size = 0x400, scoped, tag = 'input window, operand 12, single buffered']
    #allocation20 [shape = 'u8[16384]{0}', space=vmem, size = 0x4000, scoped, tag = 'input window, operand 15, single buffered']
    #allocation21 [shape = 's32[1]{0}', space=sflag, size = 0x4, scoped, tag = 'scoped memory for tpu_custom_call.1']
    #allocation22 [shape = 'u8[4096]{0}', space=vmem, size = 0x1000, scoped, tag = 'output window, operand 0, single buffered']
    #allocation23 [shape = 'u8[2048]{0}', space=vmem, size = 0x800, scoped, tag = 'output window, operand 1, single buffered']
    #allocation24 [shape = 's32[1]{0}', space=sflag, size = 0x4, scoped, tag = 'scoped memory for tpu_custom_call.1']
    #allocation25 [shape = 'u8[2048]{0}', space=vmem, size = 0x800, scoped, tag = 'output window, operand 2, single buffered']
    %25 = vsyncpa [#allocation3], 0
    %26 = vsyncpa [#allocation6], 0
    %27 = vsyncpa [#allocation9], 0
    %28 = vsyncpa [#allocation12], 0
    %29 = vsyncpa [#allocation15], 0
    %30 = vsyncpa [#allocation18], 0
    %31 = vsyncpa [#allocation21], 0
    %32 = vsyncpa [#allocation4], 0
    %33 = vsyncpa [#allocation24], 0
    // Predicated region
    $region2: #{tpu_custom_call.1} parent=1 // pred_check
      _
    $region3: #{tpu_custom_call.1} parent=1 // pred_check_branch
      %35 = sbr.rel (0) target = $region5
    $region4: #{tpu_custom_call.1} parent=1 // pred_region
      %s37 = ssub.s32 64, 64
      %38 = vsyncadd [#allocation3], %s37
      %s40 = sshll.u32 [#allocation2], 4
      %s41 = int_to_ptr.vmem [resolvable:$true] %s40
      %43 = dma.hbm_to_vmem [thread:$0]  %s0, 64, %s41, [#allocation3]
    $region5: #{tpu_custom_call.1} parent=1 // pred_fallthru
      _
    // Predicated region
    $region6: #{tpu_custom_call.1} parent=1 // pred_check
      _
    $region7: #{tpu_custom_call.1} parent=1 // pred_check_branch
      %45 = sbr.rel (0) target = $region9
    $region8: #{tpu_custom_call.1} parent=1 // pred_region
      %s47 = ssub.s32 32, 32
      %48 = vsyncadd [#allocation6], %s47
      %s50 = sshll.u32 [#allocation5], 4
      %s51 = int_to_ptr.vmem [resolvable:$true] %s50
      %53 = dma.hbm_to_vmem [thread:$0]  %s1, 32, %s51, [#allocation6]
    $region9: #{tpu_custom_call.1} parent=1 // pred_fallthru
      _
    // Predicated region
    $region10: #{tpu_custom_call.1} parent=1 // pred_check
      _
    $region11: #{tpu_custom_call.1} parent=1 // pred_check_branch
      %55 = sbr.rel (0) target = $region13
    $region12: #{tpu_custom_call.1} parent=1 // pred_region
      %s57 = ssub.s32 32, 32
      %58 = vsyncadd [#allocation6], %s57
      %s60 = sshll.u32 [#allocation7], 4
      %s61 = int_to_ptr.vmem [resolvable:$true] %s60
      %63 = dma.hbm_to_vmem [thread:$0]  %s2, 32, %s61, [#allocation6]
    $region13: #{tpu_custom_call.1} parent=1 // pred_fallthru
      _
    // Predicated region
    $region14: #{tpu_custom_call.1} parent=1 // pred_check
      _
    $region15: #{tpu_custom_call.1} parent=1 // pred_check_branch
      %65 = sbr.rel (0) target = $region17
    $region16: #{tpu_custom_call.1} parent=1 // pred_region
      %s67 = ssub.s32 256, 256
      %68 = vsyncadd [#allocation9], %s67
      %s69 = sshll.u32 [#allocation8], 4
      %s70 = int_to_ptr.vmem [resolvable:$true] %s69
      %75 = dma.hbm_to_vmem [thread:$0]  %s3, 256, %s70, [#allocation9], 64, 64, 4
    $region17: #{tpu_custom_call.1} parent=1 // pred_fallthru
      _
    // Predicated region
    $region18: #{tpu_custom_call.1} parent=1 // pred_check
      _
    $region19: #{tpu_custom_call.1} parent=1 // pred_check_branch
      %77 = sbr.rel (0) target = $region21
    $region20: #{tpu_custom_call.1} parent=1 // pred_region
      _
    $region21: #{tpu_custom_call.1} parent=1 // pred_fallthru
      _
    // Predicated region
    $region22: #{tpu_custom_call.1} parent=1 // pred_check
      _
    $region23: #{tpu_custom_call.1} parent=1 // pred_check_branch
      %79 = sbr.rel (0) target = $region25
    $region24: #{tpu_custom_call.1} parent=1 // pred_region
      %s81 = ssub.s32 512, 512
      %82 = vsyncadd [#allocation9], %s81
      %s83 = sshll.u32 [#allocation10], 4
      %s84 = int_to_ptr.vmem [resolvable:$true] %s83
      %89 = dma.hbm_to_vmem [thread:$0]  %s5, 512, %s84, [#allocation9], 64, 64, 4
    $region25: #{tpu_custom_call.1} parent=1 // pred_fallthru
      _
    // Predicated region
    $region26: #{tpu_custom_call.1} parent=1 // pred_check
      _
    $region27: #{tpu_custom_call.1} parent=1 // pred_check_branch
      %91 = sbr.rel (0) target = $region29
    $region28: #{tpu_custom_call.1} parent=1 // pred_region
      %s93 = ssub.s32 16, 16
      %94 = vsyncadd [#allocation12], %s93
      %s96 = sshll.u32 [#allocation11], 4
      %s97 = int_to_ptr.vmem [resolvable:$true] %s96
      %99 = dma.hbm_to_vmem [thread:$0]  %s6, 16, %s97, [#allocation12]
    $region29: #{tpu_custom_call.1} parent=1 // pred_fallthru
      _
    // Predicated region
    $region30: #{tpu_custom_call.1} parent=1 // pred_check
      _
    $region31: #{tpu_custom_call.1} parent=1 // pred_check_branch
      %101 = sbr.rel (0) target = $region33
    $region32: #{tpu_custom_call.1} parent=1 // pred_region
      %s103 = ssub.s32 512, 512
      %104 = vsyncadd [#allocation12], %s103
      %s105 = sshll.u32 [#allocation13], 4
      %s106 = int_to_ptr.vmem [resolvable:$true] %s105
      %111 = dma.hbm_to_vmem [thread:$0]  %s7, 512, %s106, [#allocation12], 64, 64, 4
    $region33: #{tpu_custom_call.1} parent=1 // pred_fallthru
      _
    // Predicated region
    $region34: #{tpu_custom_call.1} parent=1 // pred_check
      _
    $region35: #{tpu_custom_call.1} parent=1 // pred_check_branch
      %113 = sbr.rel (0) target = $region37
    $region36: #{tpu_custom_call.1} parent=1 // pred_region
      %s115 = ssub.s32 16, 16
      %116 = vsyncadd [#allocation15], %s115
      %s118 = sshll.u32 [#allocation14], 4
      %s119 = int_to_ptr.vmem [resolvable:$true] %s118
      %121 = dma.hbm_to_vmem [thread:$0]  %s8, 16, %s119, [#allocation15]
    $region37: #{tpu_custom_call.1} parent=1 // pred_fallthru
      _
    // Predicated region
    $region38: #{tpu_custom_call.1} parent=1 // pred_check
      _
    $region39: #{tpu_custom_call.1} parent=1 // pred_check_branch
      %123 = sbr.rel (0) target = $region41
    $region40: #{tpu_custom_call.1} parent=1 // pred_region
      %s125 = ssub.s32 256, 256
      %126 = vsyncadd [#allocation15], %s125
      %s127 = sshll.u32 [#allocation16], 4
      %s128 = int_to_ptr.vmem [resolvable:$true] %s127
      %133 = dma.hbm_to_vmem [thread:$0]  %s9, 256, %s128, [#allocation15], 64, 64, 4
    $region41: #{tpu_custom_call.1} parent=1 // pred_fallthru
      _
    // Predicated region
    $region42: #{tpu_custom_call.1} parent=1 // pred_check
      _
    $region43: #{tpu_custom_call.1} parent=1 // pred_check_branch
      %135 = sbr.rel (0) target = $region45
    $region44: #{tpu_custom_call.1} parent=1 // pred_region
      %s137 = ssub.s32 16, 16
      %138 = vsyncadd [#allocation18], %s137
      %s140 = sshll.u32 [#allocation17], 4
      %s141 = int_to_ptr.vmem [resolvable:$true] %s140
      %143 = dma.hbm_to_vmem [thread:$0]  %s10, 16, %s141, [#allocation18]
    $region45: #{tpu_custom_call.1} parent=1 // pred_fallthru
      _
    // Predicated region
    $region46: #{tpu_custom_call.1} parent=1 // pred_check
      _
    $region47: #{tpu_custom_call.1} parent=1 // pred_check_branch
      %145 = sbr.rel (0) target = $region49
    $region48: #{tpu_custom_call.1} parent=1 // pred_region
      _
    $region49: #{tpu_custom_call.1} parent=1 // pred_fallthru
      _
    // Predicated region
    $region50: #{tpu_custom_call.1} parent=1 // pred_check
      _
    $region51: #{tpu_custom_call.1} parent=1 // pred_check_branch
      %147 = sbr.rel (0) target = $region53
    $region52: #{tpu_custom_call.1} parent=1 // pred_region
      %s149 = ssub.s32 16, 16
      %150 = vsyncadd [#allocation18], %s149
      %s152 = sshll.u32 [#allocation19], 4
      %s153 = int_to_ptr.vmem [resolvable:$true] %s152
      %155 = dma.hbm_to_vmem [thread:$0]  %s12, 16, %s153, [#allocation18]
    $region53: #{tpu_custom_call.1} parent=1 // pred_fallthru
      _
    // Predicated region
    $region54: #{tpu_custom_call.1} parent=1 // pred_check
      _
    $region55: #{tpu_custom_call.1} parent=1 // pred_check_branch
      %157 = sbr.rel (0) target = $region57
    $region56: #{tpu_custom_call.1} parent=1 // pred_region
      _
    $region57: #{tpu_custom_call.1} parent=1 // pred_fallthru
      _
    // Predicated region
    $region58: #{tpu_custom_call.1} parent=1 // pred_check
      _
    $region59: #{tpu_custom_call.1} parent=1 // pred_check_branch
      %159 = sbr.rel (0) target = $region61
    $region60: #{tpu_custom_call.1} parent=1 // pred_region
      _
    $region61: #{tpu_custom_call.1} parent=1 // pred_fallthru
      _
    // Predicated region
    $region62: #{tpu_custom_call.1} parent=1 // pred_check
      _
    $region63: #{tpu_custom_call.1} parent=1 // pred_check_branch
      %161 = sbr.rel (0) target = $region65
    $region64: #{tpu_custom_call.1} parent=1 // pred_region
      %s163 = ssub.s32 512, 512
      %164 = vsyncadd [#allocation21], %s163
      %s165 = sshll.u32 [#allocation20], 4
      %s166 = int_to_ptr.vmem [resolvable:$true] %s165
      %171 = dma.hbm_to_vmem [thread:$0]  %s15, 512, %s166, [#allocation21], 64, 64, 4
    $region65: #{tpu_custom_call.1} parent=1 // pred_fallthru
      _
    // Predicated region
    $region66: #{tpu_custom_call.1} parent=1 // pred_check
      _
    $region67: #{tpu_custom_call.1} parent=1 // pred_check_branch
      %173 = sbr.rel (0) target = $region69
    $region68: #{tpu_custom_call.1} parent=1 // pred_region
      _
    $region69: #{tpu_custom_call.1} parent=1 // pred_fallthru
      _
    // Predicated region
    $region70: #{tpu_custom_call.1} parent=1 // pred_check
      _
    $region71: #{tpu_custom_call.1} parent=1 // pred_check_branch
      %175 = sbr.rel (0) target = $region73
    $region72: #{tpu_custom_call.1} parent=1 // pred_region
      %176 = dma.done [#allocation3], 64
    $region73: #{tpu_custom_call.1} parent=1 // pred_fallthru
      _
    // Predicated region
    $region74: #{tpu_custom_call.1} parent=1 // pred_check
      _
    $region75: #{tpu_custom_call.1} parent=1 // pred_check_branch
      %178 = sbr.rel (0) target = $region77
    $region76: #{tpu_custom_call.1} parent=1 // pred_region
      %179 = dma.done [#allocation6], 32
    $region77: #{tpu_custom_call.1} parent=1 // pred_fallthru
      _
    // Predicated region
    $region78: #{tpu_custom_call.1} parent=1 // pred_check
      _
    $region79: #{tpu_custom_call.1} parent=1 // pred_check_branch
      %181 = sbr.rel (0) target = $region81
    $region80: #{tpu_custom_call.1} parent=1 // pred_region
      %182 = dma.done [#allocation6], 32
    $region81: #{tpu_custom_call.1} parent=1 // pred_fallthru
      _
    // Predicated region
    $region82: #{tpu_custom_call.1} parent=1 // pred_check
      _
    $region83: #{tpu_custom_call.1} parent=1 // pred_check_branch
      %184 = sbr.rel (0) target = $region85
    $region84: #{tpu_custom_call.1} parent=1 // pred_region
      %185 = dma.done [#allocation9], 256
    $region85: #{tpu_custom_call.1} parent=1 // pred_fallthru
      _
    // Predicated region
    $region86: #{tpu_custom_call.1} parent=1 // pred_check
      _
    $region87: #{tpu_custom_call.1} parent=1 // pred_check_branch
      %187 = sbr.rel (0) target = $region89
    $region88: #{tpu_custom_call.1} parent=1 // pred_region
      %188 = dma.done [#allocation9], 512
    $region89: #{tpu_custom_call.1} parent=1 // pred_fallthru
      _
    // Predicated region
    $region90: #{tpu_custom_call.1} parent=1 // pred_check
      _
    $region91: #{tpu_custom_call.1} parent=1 // pred_check_branch
      %190 = sbr.rel (0) target = $region93
    $region92: #{tpu_custom_call.1} parent=1 // pred_region
      %191 = dma.done [#allocation12], 16
    $region93: #{tpu_custom_call.1} parent=1 // pred_fallthru
      _
    // Predicated region
    $region94: #{tpu_custom_call.1} parent=1 // pred_check
      _
    $region95: #{tpu_custom_call.1} parent=1 // pred_check_branch
      %193 = sbr.rel (0) target = $region97
    $region96: #{tpu_custom_call.1} parent=1 // pred_region
      %194 = dma.done [#allocation12], 512
    $region97: #{tpu_custom_call.1} parent=1 // pred_fallthru
      _
    // Predicated region
    $region98: #{tpu_custom_call.1} parent=1 // pred_check
      _
    $region99: #{tpu_custom_call.1} parent=1 // pred_check_branch
      %196 = sbr.rel (0) target = $region101
    $region100: #{tpu_custom_call.1} parent=1 // pred_region
      %197 = dma.done [#allocation15], 16
    $region101: #{tpu_custom_call.1} parent=1 // pred_fallthru
      _
    // Predicated region
    $region102: #{tpu_custom_call.1} parent=1 // pred_check
      _
    $region103: #{tpu_custom_call.1} parent=1 // pred_check_branch
      %199 = sbr.rel (0) target = $region105
    $region104: #{tpu_custom_call.1} parent=1 // pred_region
      %200 = dma.done [#allocation15], 256
    $region105: #{tpu_custom_call.1} parent=1 // pred_fallthru
      _
    // Predicated region
    $region106: #{tpu_custom_call.1} parent=1 // pred_check
      _
    $region107: #{tpu_custom_call.1} parent=1 // pred_check_branch
      %202 = sbr.rel (0) target = $region109
    $region108: #{tpu_custom_call.1} parent=1 // pred_region
      %203 = dma.done [#allocation18], 16
    $region109: #{tpu_custom_call.1} parent=1 // pred_fallthru
      _
    // Predicated region
    $region110: #{tpu_custom_call.1} parent=1 // pred_check
      _
    $region111: #{tpu_custom_call.1} parent=1 // pred_check_branch
      %205 = sbr.rel (0) target = $region113
    $region112: #{tpu_custom_call.1} parent=1 // pred_region
      %206 = dma.done [#allocation18], 16
    $region113: #{tpu_custom_call.1} parent=1 // pred_fallthru
      _
    // Predicated region
    $region114: #{tpu_custom_call.1} parent=1 // pred_check
      _
    $region115: #{tpu_custom_call.1} parent=1 // pred_check_branch
      %208 = sbr.rel (0) target = $region117
    $region116: #{tpu_custom_call.1} parent=1 // pred_region
      %209 = dma.done [#allocation21], 512
    $region117: #{tpu_custom_call.1} parent=1 // pred_fallthru
      _
    %v211 = vld [vmem:[#allocation2] sm:$0xf]
    %v212 = vld [vmem:[#allocation8] sm:$0xf]
    %v213 = vld [vmem:[#allocation8 + $0x4] sm:$0xf]
    %v214 = vld [vmem:[#allocation8 + $0x8] sm:$0xf]
    %v215 = vld [vmem:[#allocation8 + $0xc] sm:$0xf]
    %v216 = vld [vmem:[%s4] sm:$0x1]
    %v218 = vlaneseq
    %v219 = vshrl.u32 %v218, 7
    %v220 = vsub.s32 0, %v219
    %v221 = vrot.slane %v216, %v220
    %v227 = vunpack.c.l.b16 %v212
    %v228 = vunpack.c.l.b16 %v213
    %v229 = vunpack.c.l.b16 %v214
    %v230 = vunpack.c.l.b16 %v215
    %v231 = vpack.c.b16 %v228, %v227
    %v232 = vpack.c.b16 %v230, %v229
    %vm235 = vcmask 261120
    %v237 = vsel %vm235, %v211, 0
    %239 = vmatprep.subr.bf16.mxu0 0
    %240 = vmatpush1.bf16.msra.mxu0 %v231
    %241 = vmatprep.subr.bf16.mxu0 0
    %242 = vmatpush1.bf16.msra.mxu0 %v232
    %243 = vmatprep.subr.bf16.mxu0 0
    %244 = vmatpush1.bf16.msra.mxu0 0
    %245 = vmatprep.subr.bf16.mxu0 0
    %246 = vmatpush1.bf16.msra.mxu0 0
    %247 = vmatprep.subr.bf16.mxu0 0
    %248 = vmatpush1.bf16.msra.mxu0 0
    %249 = vmatprep.subr.bf16.mxu0 0
    %250 = vmatpush1.bf16.msra.mxu0 0
    %251 = vmatprep.subr.bf16.mxu0 0
    %252 = vmatpush1.bf16.msra.mxu0 0
    %253 = vmatprep.subr.bf16.mxu0 0
    %254 = vmatpush1.bf16.msra.mxu0 0
    %255 = vmatprep.subr.bf16.mxu0 0
    %256 = vmatpush1.bf16.msra.mxu0 0
    %257 = vmatprep.subr.bf16.mxu0 0
    %258 = vmatpush1.bf16.msra.mxu0 0
    %259 = vmatprep.subr.bf16.mxu0 0
    %260 = vmatpush1.bf16.msra.mxu0 0
    %261 = vmatprep.subr.bf16.mxu0 0
    %262 = vmatpush1.bf16.msra.mxu0 0
    %263 = vmatprep.subr.bf16.mxu0 0
    %264 = vmatpush1.bf16.msra.mxu0 0
    %265 = vmatprep.subr.bf16.mxu0 0
    %266 = vmatpush1.bf16.msra.mxu0 0
    %267 = vmatprep.subr.bf16.mxu0 0
    %268 = vmatpush1.bf16.msra.mxu0 0
    %269 = vmatprep.subr.bf16.mxu0 0
    %270 = vmatpush1.bf16.msra.mxu0 0
    %271 = vmatprep.mubr.bf16.mxu0 0
    %272 = vmatmul.mubr.bf16.gmra.mrb[0].mxu0 %v237
    %v273 = vpop.f32.mrb[0].mxu0
    %v274 = vadd.f32 %v221, %v273
    %v275 = vpop.f32.mrb[0].mxu0
    %v276 = vpop.f32.mrb[0].mxu0
    %v277 = vpop.f32.mrb[0].mxu0
    %278 = vdwg.mxu0
    %v279 = vtanh.pop %v274
    %v280 = vld [vmem:[#allocation10] sm:$0xf]
    %v281 = vld [vmem:[#allocation10 + $0x4] sm:$0xf]
    %v282 = vld [vmem:[#allocation10 + $0x8] sm:$0xf]
    %v283 = vld [vmem:[#allocation10 + $0xc] sm:$0xf]
    %v284 = vld [vmem:[#allocation10 + $0x10] sm:$0xf]
    %v285 = vld [vmem:[#allocation10 + $0x14] sm:$0xf]
    %v286 = vld [vmem:[#allocation10 + $0x18] sm:$0xf]
    %v287 = vld [vmem:[#allocation10 + $0x1c] sm:$0xf]
    %v288 = vpack.c.bf16 %v279, %v279
    %v289 = vld [vmem:[#allocation11] sm:$0x1]
    %v291 = vlaneseq
    %v292 = vshrl.u32 %v291, 7
    %v293 = vsub.s32 0, %v292
    %v294 = vrot.slane %v289, %v293
    %v304 = vunpack.c.l.b16 %v280
    %v305 = vunpack.c.l.b16 %v281
    %v306 = vunpack.c.l.b16 %v282
    %v307 = vunpack.c.l.b16 %v283
    %v308 = vunpack.c.l.b16 %v284
    %v309 = vunpack.c.l.b16 %v285
    %v310 = vunpack.c.l.b16 %v286
    %v311 = vunpack.c.l.b16 %v287
    %v312 = vpack.c.b16 %v305, %v304
    %v313 = vpack.c.b16 %v307, %v306
    %v314 = vpack.c.b16 %v309, %v308
    %v315 = vpack.c.b16 %v311, %v310
    %vm320 = vcmask 523264
    %v322 = vsel %vm320, %v288, 0
    %324 = vmatprep.subr.bf16.mxu0 0
    %325 = vmatpush1.bf16.msra.mxu0 %v312
    %326 = vmatprep.subr.bf16.mxu0 0
    %327 = vmatpush1.bf16.msra.mxu0 %v313
    %328 = vmatprep.subr.bf16.mxu0 0
    %329 = vmatpush1.bf16.msra.mxu0 %v314
    %330 = vmatprep.subr.bf16.mxu0 0
    %331 = vmatpush1.bf16.msra.mxu0 %v315
    %332 = vmatprep.subr.bf16.mxu0 0
    %333 = vmatpush1.bf16.msra.mxu0 0
    %334 = vmatprep.subr.bf16.mxu0 0
    %335 = vmatpush1.bf16.msra.mxu0 0
    %336 = vmatprep.subr.bf16.mxu0 0
    %337 = vmatpush1.bf16.msra.mxu0 0
    %338 = vmatprep.subr.bf16.mxu0 0
    %339 = vmatpush1.bf16.msra.mxu0 0
    %340 = vmatprep.subr.bf16.mxu0 0
    %341 = vmatpush1.bf16.msra.mxu0 0
    %342 = vmatprep.subr.bf16.mxu0 0
    %343 = vmatpush1.bf16.msra.mxu0 0
    %344 = vmatprep.subr.bf16.mxu0 0
    %345 = vmatpush1.bf16.msra.mxu0 0
    %346 = vmatprep.subr.bf16.mxu0 0
    %347 = vmatpush1.bf16.msra.mxu0 0
    %348 = vmatprep.subr.bf16.mxu0 0
    %349 = vmatpush1.bf16.msra.mxu0 0
    %350 = vmatprep.subr.bf16.mxu0 0
    %351 = vmatpush1.bf16.msra.mxu0 0
    %352 = vmatprep.subr.bf16.mxu0 0
    %353 = vmatpush1.bf16.msra.mxu0 0
    %354 = vmatprep.subr.bf16.mxu0 0
    %355 = vmatpush1.bf16.msra.mxu0 0
    %356 = vmatprep.mubr.bf16.mxu0 0
    %357 = vmatmul.mubr.bf16.gmra.mrb[0].mxu0 %v322
    %v358 = vpop.f32.mrb[0].mxu0
    %v359 = vadd.f32 %v294, %v358
    %v360 = vpop.f32.mrb[0].mxu0
    %v361 = vpop.f32.mrb[0].mxu0
    %v362 = vpop.f32.mrb[0].mxu0
    %363 = vdwg.mxu0
    %v364 = vtanh.pop %v359
    %v365 = vld [vmem:[#allocation13] sm:$0xf]
    %v366 = vld [vmem:[#allocation13 + $0x4] sm:$0xf]
    %v367 = vld [vmem:[#allocation13 + $0x8] sm:$0xf]
    %v368 = vld [vmem:[#allocation13 + $0xc] sm:$0xf]
    %v369 = vld [vmem:[#allocation13 + $0x10] sm:$0xf]
    %v370 = vld [vmem:[#allocation13 + $0x14] sm:$0xf]
    %v371 = vld [vmem:[#allocation13 + $0x18] sm:$0xf]
    %v372 = vld [vmem:[#allocation13 + $0x1c] sm:$0xf]
    %v373 = vpack.c.bf16 %v364, %v364
    %v374 = vld [vmem:[#allocation14] sm:$0x1]
    %v376 = vlaneseq
    %v377 = vshrl.u32 %v376, 7
    %v378 = vsub.s32 0, %v377
    %v379 = vrot.slane %v374, %v378
    %v389 = vunpack.c.l.b16 %v365
    %v390 = vunpack.c.l.b16 %v366
    %v391 = vunpack.c.l.b16 %v367
    %v392 = vunpack.c.l.b16 %v368
    %v393 = vunpack.c.l.b16 %v369
    %v394 = vunpack.c.l.b16 %v370
    %v395 = vunpack.c.l.b16 %v371
    %v396 = vunpack.c.l.b16 %v372
    %v397 = vpack.c.b16 %v390, %v389
    %v398 = vpack.c.b16 %v392, %v391
    %v399 = vpack.c.b16 %v394, %v393
    %v400 = vpack.c.b16 %v396, %v395
    %v406 = vsel %vm320, %v373, 0
    %408 = vmatprep.subr.bf16.mxu0 0
    %409 = vmatpush1.bf16.msra.mxu0 %v397
    %410 = vmatprep.subr.bf16.mxu0 0
    %411 = vmatpush1.bf16.msra.mxu0 %v398
    %412 = vmatprep.subr.bf16.mxu0 0
    %413 = vmatpush1.bf16.msra.mxu0 %v399
    %414 = vmatprep.subr.bf16.mxu0 0
    %415 = vmatpush1.bf16.msra.mxu0 %v400
    %416 = vmatprep.subr.bf16.mxu0 0
    %417 = vmatpush1.bf16.msra.mxu0 0
    %418 = vmatprep.subr.bf16.mxu0 0
    %419 = vmatpush1.bf16.msra.mxu0 0
    %420 = vmatprep.subr.bf16.mxu0 0
    %421 = vmatpush1.bf16.msra.mxu0 0
    %422 = vmatprep.subr.bf16.mxu0 0
    %423 = vmatpush1.bf16.msra.mxu0 0
    %424 = vmatprep.subr.bf16.mxu0 0
    %425 = vmatpush1.bf16.msra.mxu0 0
    %426 = vmatprep.subr.bf16.mxu0 0
    %427 = vmatpush1.bf16.msra.mxu0 0
    %428 = vmatprep.subr.bf16.mxu0 0
    %429 = vmatpush1.bf16.msra.mxu0 0
    %430 = vmatprep.subr.bf16.mxu0 0
    %431 = vmatpush1.bf16.msra.mxu0 0
    %432 = vmatprep.subr.bf16.mxu0 0
    %433 = vmatpush1.bf16.msra.mxu0 0
    %434 = vmatprep.subr.bf16.mxu0 0
    %435 = vmatpush1.bf16.msra.mxu0 0
    %436 = vmatprep.subr.bf16.mxu0 0
    %437 = vmatpush1.bf16.msra.mxu0 0
    %438 = vmatprep.subr.bf16.mxu0 0
    %439 = vmatpush1.bf16.msra.mxu0 0
    %440 = vmatprep.mubr.bf16.mxu0 0
    %441 = vmatmul.mubr.bf16.gmra.mrb[0].mxu0 %v406
    %v442 = vpop.f32.mrb[0].mxu0
    %v443 = vadd.f32 %v379, %v442
    %v444 = vpop.f32.mrb[0].mxu0
    %v445 = vpop.f32.mrb[0].mxu0
    %v446 = vpop.f32.mrb[0].mxu0
    %447 = vdwg.mxu0
    %448 = vst [vmem:[#allocation22] sm:$0xff] %v443
    %v449 = vld [vmem:[#allocation5] sm:$0x3]
    %v450 = vld [vmem:[#allocation16] sm:$0xf]
    %v451 = vld [vmem:[#allocation16 + $0x4] sm:$0xf]
    %v452 = vld [vmem:[#allocation16 + $0x8] sm:$0xf]
    %v453 = vld [vmem:[#allocation16 + $0xc] sm:$0xf]
    %v454 = vld [vmem:[#allocation17] sm:$0x1]
    %v456 = vlaneseq
    %v457 = vshrl.u32 %v456, 7
    %v458 = vsub.s32 0, %v457
    %v459 = vrot.slane %v454, %v458
    %v465 = vunpack.c.l.b16 %v450
    %v466 = vunpack.c.l.b16 %v451
    %v467 = vunpack.c.l.b16 %v452
    %v468 = vunpack.c.l.b16 %v453
    %v469 = vpack.c.b16 %v466, %v465
    %v470 = vpack.c.b16 %v468, %v467
    %v474 = vsel %vm235, %v449, 0
    %476 = vmatprep.subr.bf16.mxu0 0
    %477 = vmatpush1.bf16.msra.mxu0 %v469
    %478 = vmatprep.subr.bf16.mxu0 0
    %479 = vmatpush1.bf16.msra.mxu0 %v470
    %480 = vmatprep.subr.bf16.mxu0 0
    %481 = vmatpush1.bf16.msra.mxu0 0
    %482 = vmatprep.subr.bf16.mxu0 0
    %483 = vmatpush1.bf16.msra.mxu0 0
    %484 = vmatprep.subr.bf16.mxu0 0
    %485 = vmatpush1.bf16.msra.mxu0 0
    %486 = vmatprep.subr.bf16.mxu0 0
    %487 = vmatpush1.bf16.msra.mxu0 0
    %488 = vmatprep.subr.bf16.mxu0 0
    %489 = vmatpush1.bf16.msra.mxu0 0
    %490 = vmatprep.subr.bf16.mxu0 0
    %491 = vmatpush1.bf16.msra.mxu0 0
    %492 = vmatprep.subr.bf16.mxu0 0
    %493 = vmatpush1.bf16.msra.mxu0 0
    %494 = vmatprep.subr.bf16.mxu0 0
    %495 = vmatpush1.bf16.msra.mxu0 0
    %496 = vmatprep.subr.bf16.mxu0 0
    %497 = vmatpush1.bf16.msra.mxu0 0
    %498 = vmatprep.subr.bf16.mxu0 0
    %499 = vmatpush1.bf16.msra.mxu0 0
    %500 = vmatprep.subr.bf16.mxu0 0
    %501 = vmatpush1.bf16.msra.mxu0 0
    %502 = vmatprep.subr.bf16.mxu0 0
    %503 = vmatpush1.bf16.msra.mxu0 0
    %504 = vmatprep.subr.bf16.mxu0 0
    %505 = vmatpush1.bf16.msra.mxu0 0
    %506 = vmatprep.subr.bf16.mxu0 0
    %507 = vmatpush1.bf16.msra.mxu0 0
    %508 = vmatprep.mubr.bf16.mxu0 0
    %509 = vmatmul.mubr.bf16.gmra.mrb[0].mxu0 %v474
    %v510 = vpop.f32.mrb[0].mxu0
    %v511 = vadd.f32 %v459, %v510
    %v512 = vpop.f32.mrb[0].mxu0
    %v513 = vpop.f32.mrb[0].mxu0
    %v514 = vpop.f32.mrb[0].mxu0
    %515 = vdwg.mxu0
    %v516 = vtanh.pop %v511
    %v517 = vld [vmem:[%s11] sm:$0xf]
    %v518 = vld [vmem:[%s11 + $0x4] sm:$0xf]
    %v519 = vld [vmem:[%s11 + $0x8] sm:$0xf]
    %v520 = vld [vmem:[%s11 + $0xc] sm:$0xf]
    %v521 = vld [vmem:[%s11 + $0x10] sm:$0xf]
    %v522 = vld [vmem:[%s11 + $0x14] sm:$0xf]
    %v523 = vld [vmem:[%s11 + $0x18] sm:$0xf]
    %v524 = vld [vmem:[%s11 + $0x1c] sm:$0xf]
    %v525 = vpack.c.bf16 %v516, %v516
    %v526 = vld [vmem:[#allocation19] sm:$0x1]
    %v528 = vlaneseq
    %v529 = vshrl.u32 %v528, 7
    %v530 = vsub.s32 0, %v529
    %v531 = vrot.slane %v526, %v530
    %v541 = vunpack.c.l.b16 %v517
    %v542 = vunpack.c.l.b16 %v518
    %v543 = vunpack.c.l.b16 %v519
    %v544 = vunpack.c.l.b16 %v520
    %v545 = vunpack.c.l.b16 %v521
    %v546 = vunpack.c.l.b16 %v522
    %v547 = vunpack.c.l.b16 %v523
    %v548 = vunpack.c.l.b16 %v524
    %v549 = vpack.c.b16 %v542, %v541
    %v550 = vpack.c.b16 %v544, %v543
    %v551 = vpack.c.b16 %v546, %v545
    %v552 = vpack.c.b16 %v548, %v547
    %v558 = vsel %vm320, %v525, 0
    %560 = vmatprep.subr.bf16.mxu0 0
    %561 = vmatpush1.bf16.msra.mxu0 %v549
    %562 = vmatprep.subr.bf16.mxu0 0
    %563 = vmatpush1.bf16.msra.mxu0 %v550
    %564 = vmatprep.subr.bf16.mxu0 0
    %565 = vmatpush1.bf16.msra.mxu0 %v551
    %566 = vmatprep.subr.bf16.mxu0 0
    %567 = vmatpush1.bf16.msra.mxu0 %v552
    %568 = vmatprep.subr.bf16.mxu0 0
    %569 = vmatpush1.bf16.msra.mxu0 0
    %570 = vmatprep.subr.bf16.mxu0 0
    %571 = vmatpush1.bf16.msra.mxu0 0
    %572 = vmatprep.subr.bf16.mxu0 0
    %573 = vmatpush1.bf16.msra.mxu0 0
    %574 = vmatprep.subr.bf16.mxu0 0
    %575 = vmatpush1.bf16.msra.mxu0 0
    %576 = vmatprep.subr.bf16.mxu0 0
    %577 = vmatpush1.bf16.msra.mxu0 0
    %578 = vmatprep.subr.bf16.mxu0 0
    %579 = vmatpush1.bf16.msra.mxu0 0
    %580 = vmatprep.subr.bf16.mxu0 0
    %581 = vmatpush1.bf16.msra.mxu0 0
    %582 = vmatprep.subr.bf16.mxu0 0
    %583 = vmatpush1.bf16.msra.mxu0 0
    %584 = vmatprep.subr.bf16.mxu0 0
    %585 = vmatpush1.bf16.msra.mxu0 0
    %586 = vmatprep.subr.bf16.mxu0 0
    %587 = vmatpush1.bf16.msra.mxu0 0
    %588 = vmatprep.subr.bf16.mxu0 0
    %589 = vmatpush1.bf16.msra.mxu0 0
    %590 = vmatprep.subr.bf16.mxu0 0
    %591 = vmatpush1.bf16.msra.mxu0 0
    %592 = vmatprep.mubr.bf16.mxu0 0
    %593 = vmatmul.mubr.bf16.gmra.mrb[0].mxu0 %v558
    %v594 = vpop.f32.mrb[0].mxu0
    %v595 = vadd.f32 %v531, %v594
    %v596 = vpop.f32.mrb[0].mxu0
    %v597 = vpop.f32.mrb[0].mxu0
    %v598 = vpop.f32.mrb[0].mxu0
    %599 = vdwg.mxu0
    %600 = vst [vmem:[#allocation23] sm:$0xf] %v595
    %v601 = vld [vmem:[#allocation7] sm:$0x3]
    %v602 = vld [vmem:[%s13] sm:$0xf]
    %v603 = vld [vmem:[%s13 + $0x4] sm:$0xf]
    %v604 = vld [vmem:[%s13 + $0x8] sm:$0xf]
    %v605 = vld [vmem:[%s13 + $0xc] sm:$0xf]
    %v606 = vld [vmem:[%s14] sm:$0x1]
    %v608 = vlaneseq
    %v609 = vshrl.u32 %v608, 7
    %v610 = vsub.s32 0, %v609
    %v611 = vrot.slane %v606, %v610
    %v617 = vunpack.c.l.b16 %v602
    %v618 = vunpack.c.l.b16 %v603
    %v619 = vunpack.c.l.b16 %v604
    %v620 = vunpack.c.l.b16 %v605
    %v621 = vpack.c.b16 %v618, %v617
    %v622 = vpack.c.b16 %v620, %v619
    %v626 = vsel %vm235, %v601, 0
    %628 = vmatprep.subr.bf16.mxu0 0
    %629 = vmatpush1.bf16.msra.mxu0 %v621
    %630 = vmatprep.subr.bf16.mxu0 0
    %631 = vmatpush1.bf16.msra.mxu0 %v622
    %632 = vmatprep.subr.bf16.mxu0 0
    %633 = vmatpush1.bf16.msra.mxu0 0
    %634 = vmatprep.subr.bf16.mxu0 0
    %635 = vmatpush1.bf16.msra.mxu0 0
    %636 = vmatprep.subr.bf16.mxu0 0
    %637 = vmatpush1.bf16.msra.mxu0 0
    %638 = vmatprep.subr.bf16.mxu0 0
    %639 = vmatpush1.bf16.msra.mxu0 0
    %640 = vmatprep.subr.bf16.mxu0 0
    %641 = vmatpush1.bf16.msra.mxu0 0
    %642 = vmatprep.subr.bf16.mxu0 0
    %643 = vmatpush1.bf16.msra.mxu0 0
    %644 = vmatprep.subr.bf16.mxu0 0
    %645 = vmatpush1.bf16.msra.mxu0 0
    %646 = vmatprep.subr.bf16.mxu0 0
    %647 = vmatpush1.bf16.msra.mxu0 0
    %648 = vmatprep.subr.bf16.mxu0 0
    %649 = vmatpush1.bf16.msra.mxu0 0
    %650 = vmatprep.subr.bf16.mxu0 0
    %651 = vmatpush1.bf16.msra.mxu0 0
    %652 = vmatprep.subr.bf16.mxu0 0
    %653 = vmatpush1.bf16.msra.mxu0 0
    %654 = vmatprep.subr.bf16.mxu0 0
    %655 = vmatpush1.bf16.msra.mxu0 0
    %656 = vmatprep.subr.bf16.mxu0 0
    %657 = vmatpush1.bf16.msra.mxu0 0
    %658 = vmatprep.subr.bf16.mxu0 0
    %659 = vmatpush1.bf16.msra.mxu0 0
    %660 = vmatprep.mubr.bf16.mxu0 0
    %661 = vmatmul.mubr.bf16.gmra.mrb[0].mxu0 %v626
    %v662 = vpop.f32.mrb[0].mxu0
    %v663 = vadd.f32 %v611, %v662
    %v664 = vpop.f32.mrb[0].mxu0
    %v665 = vpop.f32.mrb[0].mxu0
    %v666 = vpop.f32.mrb[0].mxu0
    %667 = vdwg.mxu0
    %v668 = vtanh.pop %v663
    %v669 = vld [vmem:[#allocation20] sm:$0xf]
    %v670 = vld [vmem:[#allocation20 + $0x4] sm:$0xf]
    %v671 = vld [vmem:[#allocation20 + $0x8] sm:$0xf]
    %v672 = vld [vmem:[#allocation20 + $0xc] sm:$0xf]
    %v673 = vld [vmem:[#allocation20 + $0x10] sm:$0xf]
    %v674 = vld [vmem:[#allocation20 + $0x14] sm:$0xf]
    %v675 = vld [vmem:[#allocation20 + $0x18] sm:$0xf]
    %v676 = vld [vmem:[#allocation20 + $0x1c] sm:$0xf]
    %v677 = vpack.c.bf16 %v668, %v668
    %v678 = vld [vmem:[%s16] sm:$0x1]
    %v680 = vlaneseq
    %v681 = vshrl.u32 %v680, 7
    %v682 = vsub.s32 0, %v681
    %v683 = vrot.slane %v678, %v682
    %v693 = vunpack.c.l.b16 %v669
    %v694 = vunpack.c.l.b16 %v670
    %v695 = vunpack.c.l.b16 %v671
    %v696 = vunpack.c.l.b16 %v672
    %v697 = vunpack.c.l.b16 %v673
    %v698 = vunpack.c.l.b16 %v674
    %v699 = vunpack.c.l.b16 %v675
    %v700 = vunpack.c.l.b16 %v676
    %v701 = vpack.c.b16 %v694, %v693
    %v702 = vpack.c.b16 %v696, %v695
    %v703 = vpack.c.b16 %v698, %v697
    %v704 = vpack.c.b16 %v700, %v699
    %v710 = vsel %vm320, %v677, 0
    %712 = vmatprep.subr.bf16.mxu0 0
    %713 = vmatpush1.bf16.msra.mxu0 %v701
    %714 = vmatprep.subr.bf16.mxu0 0
    %715 = vmatpush1.bf16.msra.mxu0 %v702
    %716 = vmatprep.subr.bf16.mxu0 0
    %717 = vmatpush1.bf16.msra.mxu0 %v703
    %718 = vmatprep.subr.bf16.mxu0 0
    %719 = vmatpush1.bf16.msra.mxu0 %v704
    %720 = vmatprep.subr.bf16.mxu0 0
    %721 = vmatpush1.bf16.msra.mxu0 0
    %722 = vmatprep.subr.bf16.mxu0 0
    %723 = vmatpush1.bf16.msra.mxu0 0
    %724 = vmatprep.subr.bf16.mxu0 0
    %725 = vmatpush1.bf16.msra.mxu0 0
    %726 = vmatprep.subr.bf16.mxu0 0
    %727 = vmatpush1.bf16.msra.mxu0 0
    %728 = vmatprep.subr.bf16.mxu0 0
    %729 = vmatpush1.bf16.msra.mxu0 0
    %730 = vmatprep.subr.bf16.mxu0 0
    %731 = vmatpush1.bf16.msra.mxu0 0
    %732 = vmatprep.subr.bf16.mxu0 0
    %733 = vmatpush1.bf16.msra.mxu0 0
    %734 = vmatprep.subr.bf16.mxu0 0
    %735 = vmatpush1.bf16.msra.mxu0 0
    %736 = vmatprep.subr.bf16.mxu0 0
    %737 = vmatpush1.bf16.msra.mxu0 0
    %738 = vmatprep.subr.bf16.mxu0 0
    %739 = vmatpush1.bf16.msra.mxu0 0
    %740 = vmatprep.subr.bf16.mxu0 0
    %741 = vmatpush1.bf16.msra.mxu0 0
    %742 = vmatprep.subr.bf16.mxu0 0
    %743 = vmatpush1.bf16.msra.mxu0 0
    %744 = vmatprep.mubr.bf16.mxu0 0
    %745 = vmatmul.mubr.bf16.gmra.mrb[0].mxu0 %v710
    %v746 = vpop.f32.mrb[0].mxu0
    %v747 = vadd.f32 %v683, %v746
    %v748 = vpop.f32.mrb[0].mxu0
    %v749 = vpop.f32.mrb[0].mxu0
    %v750 = vpop.f32.mrb[0].mxu0
    %751 = vdwg.mxu0
    %752 = vst [vmem:[#allocation25] sm:$0xf] %v747
    // Predicated region
    $region118: #{tpu_custom_call.1} parent=1 // pred_check
      _
    $region119: #{tpu_custom_call.1} parent=1 // pred_check_branch
      %754 = sbr.rel (0) target = $region121
    $region120: #{tpu_custom_call.1} parent=1 // pred_region
      %s756 = ssub.s32 128, 128
      %757 = vsyncadd [#allocation4], %s756
      %s759 = sshll.u32 [#allocation22], 4
      %s760 = int_to_ptr.vmem [resolvable:$true] %s759
      %762 = dma.vmem_to_hbm [thread:$0]  %s760, 128, %s17, [#allocation4]
    $region121: #{tpu_custom_call.1} parent=1 // pred_fallthru
      _
    // Predicated region
    $region122: #{tpu_custom_call.1} parent=1 // pred_check
      _
    $region123: #{tpu_custom_call.1} parent=1 // pred_check_branch
      %764 = sbr.rel (0) target = $region125
    $region124: #{tpu_custom_call.1} parent=1 // pred_region
      %s766 = ssub.s32 64, 64
      %767 = vsyncadd [#allocation24], %s766
      %s769 = sshll.u32 [#allocation23], 4
      %s770 = int_to_ptr.vmem [resolvable:$true] %s769
      %772 = dma.vmem_to_hbm [thread:$0]  %s770, 64, %s18, [#allocation24]
    $region125: #{tpu_custom_call.1} parent=1 // pred_fallthru
      _
    // Predicated region
    $region126: #{tpu_custom_call.1} parent=1 // pred_check
      _
    $region127: #{tpu_custom_call.1} parent=1 // pred_check_branch
      %774 = sbr.rel (0) target = $region129
    $region128: #{tpu_custom_call.1} parent=1 // pred_region
      %s776 = ssub.s32 64, 64
      %777 = vsyncadd [#allocation24], %s776
      %s779 = sshll.u32 [#allocation25], 4
      %s780 = int_to_ptr.vmem [resolvable:$true] %s779
      %782 = dma.vmem_to_hbm [thread:$0]  %s780, 64, %s19, [#allocation24]
    $region129: #{tpu_custom_call.1} parent=1 // pred_fallthru
      _
    // Predicated region
    $region130: #{tpu_custom_call.1} parent=1 // pred_check
      _
    $region131: #{tpu_custom_call.1} parent=1 // pred_check_branch
      %784 = sbr.rel (0) target = $region133
    $region132: #{tpu_custom_call.1} parent=1 // pred_region
      %785 = dma.done [#allocation4], 128
    $region133: #{tpu_custom_call.1} parent=1 // pred_fallthru
      _
    // Predicated region
    $region134: #{tpu_custom_call.1} parent=1 // pred_check
      _
    $region135: #{tpu_custom_call.1} parent=1 // pred_check_branch
      %787 = sbr.rel (0) target = $region137
    $region136: #{tpu_custom_call.1} parent=1 // pred_region
      %788 = dma.done [#allocation24], 64
    $region137: #{tpu_custom_call.1} parent=1 // pred_fallthru
      _
    // Predicated region
    $region138: #{tpu_custom_call.1} parent=1 // pred_check
      _
    $region139: #{tpu_custom_call.1} parent=1 // pred_check_branch
      %790 = sbr.rel (0) target = $region141
    $region140: #{tpu_custom_call.1} parent=1 // pred_region
      %791 = dma.done [#allocation24], 64
    $region141: #{tpu_custom_call.1} parent=1 // pred_fallthru
      _
    %792 = vsyncpa [#allocation3], 1
    %793 = vsyncpa [#allocation6], 1
    %794 = vsyncpa [#allocation9], 1
    %795 = vsyncpa [#allocation12], 1
    %796 = vsyncpa [#allocation15], 1
    %797 = vsyncpa [#allocation18], 1
    %798 = vsyncpa [#allocation21], 1
    %799 = vsyncpa [#allocation4], 1
    %800 = vsyncpa [#allocation24], 1

</llo_original>
